<compile_context>
chip_gen: v7x
topology: tpu7x:2x2x1
jax: 0.10.0
libtpu: 0.0.40
codegen_flags: <defaults>
</compile_context>

<pallas_src>
import functools

import jax
import jax.numpy as jnp
from jax.experimental import pallas as pl
from jax.experimental.pallas import tpu as pltpu

LANE = 128  # lane width / padding target for the second matmul's N operand


def controller_kernel(x_ref, w1_ref, b1_ref, w2_ref, b2_ref, o_ref, *, out_features):
    # hidden = relu(x @ W1 + b1)        (tile_m, 12) @ (12, 256)  (Mosaic pads K in VMEM)
    h = jnp.dot(x_ref[...], w1_ref[...], preferred_element_type=jnp.float32)
    h = jnp.maximum(h + b1_ref[...], 0.0)               # (tile_m, 256) + (1, 256)
    # out = hidden @ W2 + b2            (tile_m, 256) @ (256, 128) lane-dense on MXU
    y = jnp.dot(h, w2_ref[...], preferred_element_type=jnp.float32)
    # Slice the real output columns before the (narrow) store — 8 B/row HBM writeback.
    o_ref[...] = (y[:, :out_features] + b2_ref[...]).astype(o_ref.dtype)


def _round_up(v, m):
    return ((v + m - 1) // m) * m


def _pick_tile_m(batch, block_m):
    if batch <= 256:
        # Small batch: a single block, rounded up to the 8-row sublane granule.
        return _round_up(max(batch, 1), 8)
    # Large batch: at least two blocks (so both v7x TensorCores get work), capped at
    # block_m rows per block.  ~2-5 MiB of double-buffered VMEM at block_m=1024,
    # far under every generation's scoped limit.
    return min(block_m, _round_up(pl.cdiv(batch, 2), 8))


@functools.partial(jax.jit, static_argnames=("block_m",))
def controller_forward(x, w1, b1, w2, b2, *, block_m=1024):
    """Forward pass of Controller.

    x:  (B, in_features)      f32
    w1: (in_features, 256)    f32   (transposed vs. nn.Linear)
    b1: (256,) or (1, 256)    f32
    w2: (256, out_features)   f32   (transposed vs. nn.Linear)
    b2: (out_features,) or (1, out_features) f32
    returns (B, out_features) f32
    """
    B, in_features = x.shape
    hidden = w1.shape[1]
    out_features = w2.shape[1]

    b1 = b1.reshape(1, hidden)
    b2 = b2.reshape(1, out_features)

    # Only the tiny, VMEM-resident w2 operand is padded (256x2 -> 256x128) so the
    # second matmul's N is lane-dense; x, w1, b1, b2 and the output are unpadded.
    n_pad = _round_up(out_features, LANE)
    w2_p = jnp.pad(w2, ((0, 0), (0, n_pad - out_features))) if n_pad != out_features else w2

    tile_m = _pick_tile_m(B, block_m)
    num_blocks = pl.cdiv(B, tile_m)   # ragged last block handled by Pallas masking

    kernel = functools.partial(controller_kernel, out_features=out_features)

    flops = 2 * B * (in_features * hidden + hidden * out_features)
    bytes_accessed = 4 * (
        x.size + w1.size + b1.size + w2_p.size + b2.size + B * out_features
    )

    out = pl.pallas_call(
        kernel,
        out_shape=jax.ShapeDtypeStruct((B, out_features), jnp.float32),
        grid=(num_blocks,),
        in_specs=[
            # x tile streams, unpadded: 48 B/row DMA (dominant streamed operand).
            pl.BlockSpec((tile_m, in_features), lambda i: (i, 0)),
            # Weights / biases: constant index_map -> VMEM-resident across steps.
            pl.BlockSpec((in_features, hidden), lambda i: (0, 0)),
            pl.BlockSpec((1, hidden), lambda i: (0, 0)),
            pl.BlockSpec((hidden, n_pad), lambda i: (0, 0)),
            pl.BlockSpec((1, out_features), lambda i: (0, 0)),
        ],
        # Narrow output block: 8 B/row writeback; OOB rows of the ragged last block
        # are masked on store.
        out_specs=pl.BlockSpec((tile_m, out_features), lambda i: (i, 0)),
        compiler_params=pltpu.CompilerParams(
            dimension_semantics=("parallel",),
        ),
        cost_estimate=pl.CostEstimate(
            flops=flops,
            transcendentals=0,
            bytes_accessed=bytes_accessed,
        ),
    )(x, w1, b1, w2_p, b2)

    return out


def init_controller_params(key, in_features=12, hidden=256, out_features=2):
    """Deterministic synthetic init matching nn.Linear shapes (transposed)."""
    k1, k2, k3, k4 = jax.random.split(key, 4)
    # PyTorch default init: U(-1/sqrt(fan_in), 1/sqrt(fan_in))
    lim1 = 1.0 / jnp.sqrt(jnp.float32(in_features))
    lim2 = 1.0 / jnp.sqrt(jnp.float32(hidden))
    w1 = jax.random.uniform(k1, (in_features, hidden), jnp.float32, -lim1, lim1)
    b1 = jax.random.uniform(k2, (1, hidden), jnp.float32, -lim1, lim1)
    w2 = jax.random.uniform(k3, (hidden, out_features), jnp.float32, -lim2, lim2)
    b2 = jax.random.uniform(k4, (1, out_features), jnp.float32, -lim2, lim2)
    return w1, b1, w2, b2


if __name__ == "__main__":
    key = jax.random.PRNGKey(0)
    kx, kp = jax.random.split(key)

    B, IN, HID, OUT = 8, 12, 256, 2
    x = jax.random.normal(kx, (B, IN), jnp.float32)
    w1, b1, w2, b2 = init_controller_params(kp, IN, HID, OUT)

    out = controller_forward(x, w1, b1, w2, b2)
    out = jax.block_until_ready(out)

    # Reference check in plain JAX (same math as the PyTorch forward).
    ref = jnp.maximum(x @ w1 + b1, 0.0) @ w2 + b2
    assert out.shape == (B, OUT)
    assert jnp.allclose(out, ref, atol=1e-5, rtol=1e-5)

    # Also exercise the multi-block grid path (large batch -> >=2 grid steps).
    B2 = 1024
    x2 = jax.random.normal(kx, (B2, IN), jnp.float32)
    out2 = jax.block_until_ready(controller_forward(x2, w1, b1, w2, b2))
    ref2 = jnp.maximum(x2 @ w1 + b1, 0.0) @ w2 + b2
    assert out2.shape == (B2, OUT)
    assert jnp.allclose(out2, ref2, atol=1e-5, rtol=1e-5)

    # And a ragged (non-multiple-of-tile) batch to exercise Pallas's masked last block.
    B3 = 777
    x3 = jax.random.normal(kx, (B3, IN), jnp.float32)
    out3 = jax.block_until_ready(controller_forward(x3, w1, b1, w2, b2))
    ref3 = jnp.maximum(x3 @ w1 + b1, 0.0) @ w2 + b2
    assert out3.shape == (B3, OUT)
    assert jnp.allclose(out3, ref3, atol=1e-5, rtol=1e-5)

    print("KERNEL_OK")
</pallas_src>

<mosaic_0001>
module attributes {stable_mosaic.version = 11 : i64} {
  func.func @controller_kernel(%arg0: i32, %arg1: memref<8x12xf32, #tpu.memory_space<vmem>>, %arg2: memref<12x256xf32, #tpu.memory_space<vmem>>, %arg3: memref<1x256xf32, #tpu.memory_space<vmem>>, %arg4: memref<256x128xf32, #tpu.memory_space<vmem>>, %arg5: memref<1x2xf32, #tpu.memory_space<vmem>>, %arg6: memref<8x2xf32, #tpu.memory_space<vmem>>) attributes {dimension_semantics = [#tpu.dimension_semantics<parallel>], iteration_bounds = array<i64: 1>, scalar_prefetch = 0 : i64, scratch_operands = 0 : i64, tpu.core_type = #tpu.core_type<tc>, window_params = [{transform_indices = @transform_0, window_bounds = array<i64: 8, 12>}, {pipeline_mode = #tpu.pipeline_mode<synchronous>, transform_indices = @transform_1, window_bounds = array<i64: 12, 256>}, {pipeline_mode = #tpu.pipeline_mode<synchronous>, transform_indices = @transform_2, window_bounds = array<i64: 1, 256>}, {pipeline_mode = #tpu.pipeline_mode<synchronous>, transform_indices = @transform_3, window_bounds = array<i64: 256, 128>}, {pipeline_mode = #tpu.pipeline_mode<synchronous>, transform_indices = @transform_4, window_bounds = array<i64: 1, 2>}, {transform_indices = @transform_5, window_bounds = array<i64: 8, 2>}]} {
    %c0 = arith.constant 0 : index
    %c0_0 = arith.constant 0 : index
    %0 = vector.load %arg1[%c0, %c0_0] : memref<8x12xf32, #tpu.memory_space<vmem>>, vector<8x12xf32>
    %c0_1 = arith.constant 0 : index
    %c0_2 = arith.constant 0 : index
    %1 = vector.load %arg2[%c0_1, %c0_2] : memref<12x256xf32, #tpu.memory_space<vmem>>, vector<12x256xf32>
    %cst = arith.constant dense<0.000000e+00> : vector<8x256xf32>
    %2 = tpu.matmul %0, %1, %cst {dimension_numbers = #tpu.dot_dimension_numbers<[1], [0], [0], [1], [0, 0, 1, 1], [], []>} : vector<8x12xf32>, vector<12x256xf32>, vector<8x256xf32> -> vector<8x256xf32>
    %c0_3 = arith.constant 0 : index
    %c0_4 = arith.constant 0 : index
    %3 = vector.load %arg3[%c0_3, %c0_4] : memref<1x256xf32, #tpu.memory_space<vmem>>, vector<1x256xf32>
    %4 = vector.broadcast %3 : vector<1x256xf32> to vector<8x256xf32>
    %5 = arith.addf %2, %4 : vector<8x256xf32>
    %cst_5 = arith.constant 0.000000e+00 : f32
    %6 = vector.broadcast %cst_5 : f32 to vector<8x256xf32>
    %7 = arith.maximumf %5, %6 : vector<8x256xf32>
    %c0_6 = arith.constant 0 : index
    %c0_7 = arith.constant 0 : index
    %8 = vector.load %arg4[%c0_6, %c0_7] : memref<256x128xf32, #tpu.memory_space<vmem>>, vector<256x128xf32>
    %cst_8 = arith.constant dense<0.000000e+00> : vector<8x128xf32>
    %9 = tpu.matmul %7, %8, %cst_8 {dimension_numbers = #tpu.dot_dimension_numbers<[1], [0], [0], [1], [0, 0, 1, 1], [], []>} : vector<8x256xf32>, vector<256x128xf32>, vector<8x128xf32> -> vector<8x128xf32>
    %10 = vector.extract_strided_slice %9 {offsets = [0, 0], sizes = [8, 2], strides = [1, 1]} : vector<8x128xf32> to vector<8x2xf32>
    %c0_9 = arith.constant 0 : index
    %c0_10 = arith.constant 0 : index
    %11 = vector.load %arg5[%c0_9, %c0_10] : memref<1x2xf32, #tpu.memory_space<vmem>>, vector<1x2xf32>
    %12 = vector.broadcast %11 : vector<1x2xf32> to vector<8x2xf32>
    %13 = arith.addf %10, %12 : vector<8x2xf32>
    %c0_11 = arith.constant 0 : index
    %c0_12 = arith.constant 0 : index
    %14 = vector.load %arg6[%c0_11, %c0_12] : memref<8x2xf32, #tpu.memory_space<vmem>>, vector<8x2xf32>
    tpu.vector_store %arg6[%c0_11, %c0_12], %13 {strides = array<i32>} : memref<8x2xf32, #tpu.memory_space<vmem>>, vector<8x2xf32>,
    return
  }
  func.func @transform_0(%arg0: i32) -> (i32, i32) {
    %c0_i32 = arith.constant 0 : i32
    %c0_i32_0 = arith.constant 0 : i32
    return %arg0, %c0_i32 : i32, i32
  }
  func.func @transform_1(%arg0: i32) -> (i32, i32) {
    %c0_i32 = arith.constant 0 : i32
    %c0_i32_0 = arith.constant 0 : i32
    %c0_i32_1 = arith.constant 0 : i32
    return %c0_i32, %c0_i32_0 : i32, i32
  }
  func.func @transform_2(%arg0: i32) -> (i32, i32) {
    %c0_i32 = arith.constant 0 : i32
    %c0_i32_0 = arith.constant 0 : i32
    %c0_i32_1 = arith.constant 0 : i32
    return %c0_i32, %c0_i32_0 : i32, i32
  }
  func.func @transform_3(%arg0: i32) -> (i32, i32) {
    %c0_i32 = arith.constant 0 : i32
    %c0_i32_0 = arith.constant 0 : i32
    %c0_i32_1 = arith.constant 0 : i32
    return %c0_i32, %c0_i32_0 : i32, i32
  }
  func.func @transform_4(%arg0: i32) -> (i32, i32) {
    %c0_i32 = arith.constant 0 : i32
    %c0_i32_0 = arith.constant 0 : i32
    %c0_i32_1 = arith.constant 0 : i32
    return %c0_i32, %c0_i32_0 : i32, i32
  }
  func.func @transform_5(%arg0: i32) -> (i32, i32) {
    %c0_i32 = arith.constant 0 : i32
    %c0_i32_0 = arith.constant 0 : i32
    return %arg0, %c0_i32 : i32, i32
  }
}

</mosaic_0001>

<llo_original>
// kernel: controller_forward.1
$region0: #{controller_forward.1}
  #allocation0 [shape = 'u32[]', space=smem, size = 0x4, offset = 0x4, fixed_abs, tag = 'smem constant byte address 0x4 - core index']
  #allocation1 [shape = 'u32[144,128]{1,0:T(1,128)}', space=vmem, size = 0x12000, scoped, tag = 'internal scratch']
  %s0 = inlined_call_operand.vmem [shape: f32[8,12], index: 0, kind: input, shape index: {}]
  %s1 = inlined_call_operand.vmem [shape: f32[12,256], index: 1, kind: input, shape index: {}]
  %s2 = inlined_call_operand.vmem [shape: f32[1,256], index: 2, kind: input, shape index: {}]
  %s3 = inlined_call_operand.vmem [shape: f32[256,128], index: 3, kind: input, shape index: {}]
  %s4 = inlined_call_operand.vmem [shape: f32[1,2], index: 4, kind: input, shape index: {}]
  %s5 = inlined_call_operand.vmem [shape: f32[8,2], index: 5, kind: output, shape index: {}]
  %s6 = sld [smem:[#allocation0]]
  $region30: #{controller_forward.1} parent=0
    _
  %s8 = ssub.s32 1, %s6
  %s9 = scalar_select 0, %s8, %s6
  // Predicated region
  $region2: #{controller_forward.1} parent=0 // pred_check
    _
  $region3: #{controller_forward.1} parent=0 // pred_check_branch
    %11 = sbr.rel (0) target = $region5
  $region4: #{controller_forward.1} parent=0 // pred_region
    _
  $region5: #{controller_forward.1} parent=0 // pred_fallthru
    _
  // Predicated region
  $region6: #{controller_forward.1} parent=0 // pred_check
    _
  $region7: #{controller_forward.1} parent=0 // pred_check_branch
    %13 = sbr.rel (0) target = $region9
  $region8: #{controller_forward.1} parent=0 // pred_region
    _
  $region9: #{controller_forward.1} parent=0 // pred_fallthru
    _
  // Predicated region
  $region10: #{controller_forward.1} parent=0 // pred_check
    _
  $region11: #{controller_forward.1} parent=0 // pred_check_branch
    %15 = sbr.rel (0) target = $region13
  $region12: #{controller_forward.1} parent=0 // pred_region
    _
  $region13: #{controller_forward.1} parent=0 // pred_fallthru
    _
  // Predicated region
  $region14: #{controller_forward.1} parent=0 // pred_check
    _
  $region15: #{controller_forward.1} parent=0 // pred_check_branch
    %17 = sbr.rel (0) target = $region17
  $region16: #{controller_forward.1} parent=0 // pred_region
    _
  $region17: #{controller_forward.1} parent=0 // pred_fallthru
    _
  // Predicated region
  $region18: #{controller_forward.1} parent=0 // pred_check
    _
  $region19: #{controller_forward.1} parent=0 // pred_check_branch
    %19 = sbr.rel (0) target = $region21
  $region20: #{controller_forward.1} parent=0 // pred_region
    _
  $region21: #{controller_forward.1} parent=0 // pred_fallthru
    _
  %v20 = vld [vmem:[%s0] sm:$0xff]
  %v21 = vld [vmem:[%s1] sm:$0xff]
  %v22 = vld [vmem:[%s1 + $0x8] sm:$0xff]
  %v23 = vld [vmem:[%s1 + $0x10] sm:$0xf]
  %v24 = vld [vmem:[%s1 + $0x18] sm:$0xf]
  %v25 = vld [vmem:[%s2] sm:$0x3]
  %v27 = vlaneseq
  %v28 = vshrl.u32 %v27, 7
  %v29 = vsub.s32 0, %v28
  %v30 = vrot.slane %v25, %v29
  %v31 = vlaneseq
  %v32 = vshrl.u32 %v31, 7
  %v33 = vsub.s32 1, %v32
  %v34 = vrot.slane %v25, %v33
  %vm37 = vcmask 97280
  %v39 = vsel %vm37, %v20, 0
  %vm41 = vcmask 1043456
  %v43 = vsel %vm41, %v23, 0
  %v46 = vsel %vm41, %v24, 0
  %48 = vmatprep.subr.mxu0 %v22
  %49 = vmatpush1.msra.mxu0 %v21
  %50 = vmatprep.subr.mxu0 %v46
  %51 = vmatpush1.msra.mxu0 %v43
  %52 = vmatprep.subr.mxu0 0.0
  %53 = vmatpush1.msra.mxu0 0.0
  %54 = vmatprep.subr.mxu0 0.0
  %55 = vmatpush1.msra.mxu0 0.0
  %56 = vmatprep.subr.mxu0 0.0
  %57 = vmatpush1.msra.mxu0 0.0
  %58 = vmatprep.subr.mxu0 0.0
  %59 = vmatpush1.msra.mxu0 0.0
  %60 = vmatprep.subr.mxu0 0.0
  %61 = vmatpush1.msra.mxu0 0.0
  %62 = vmatprep.subr.mxu0 0.0
  %63 = vmatpush1.msra.mxu0 0.0
  %64 = vmatprep.subr.mxu0 0.0
  %65 = vmatpush1.msra.mxu0 0.0
  %66 = vmatprep.subr.mxu0 0.0
  %67 = vmatpush1.msra.mxu0 0.0
  %68 = vmatprep.subr.mxu0 0.0
  %69 = vmatpush1.msra.mxu0 0.0
  %70 = vmatprep.subr.mxu0 0.0
  %71 = vmatpush1.msra.mxu0 0.0
  %72 = vmatprep.subr.mxu0 0.0
  %73 = vmatpush1.msra.mxu0 0.0
  %74 = vmatprep.subr.mxu0 0.0
  %75 = vmatpush1.msra.mxu0 0.0
  %76 = vmatprep.subr.mxu0 0.0
  %77 = vmatpush1.msra.mxu0 0.0
  %78 = vmatprep.subr.mxu0 0.0
  %79 = vmatpush1.msra.mxu0 0.0
  %80 = vmatprep.subr.mxu0 0.0
  %81 = vmatpush1.msra.mxu0 0.0
  %82 = vmatprep.subr.mxu0 0.0
  %83 = vmatpush1.msra.mxu0 0.0
  %84 = vmatprep.subr.mxu0 0.0
  %85 = vmatpush1.msra.mxu0 0.0
  %86 = vmatprep.subr.mxu0 0.0
  %87 = vmatpush1.msra.mxu0 0.0
  %88 = vmatprep.subr.mxu0 0.0
  %89 = vmatpush1.msra.mxu0 0.0
  %90 = vmatprep.subr.mxu0 0.0
  %91 = vmatpush1.msra.mxu0 0.0
  %92 = vmatprep.subr.mxu0 0.0
  %93 = vmatpush1.msra.mxu0 0.0
  %94 = vmatprep.subr.mxu0 0.0
  %95 = vmatpush1.msra.mxu0 0.0
  %96 = vmatprep.subr.mxu0 0.0
  %97 = vmatpush1.msra.mxu0 0.0
  %98 = vmatprep.subr.mxu0 0.0
  %99 = vmatpush1.msra.mxu0 0.0
  %100 = vmatprep.subr.mxu0 0.0
  %101 = vmatpush1.msra.mxu0 0.0
  %102 = vmatprep.subr.mxu0 0.0
  %103 = vmatpush1.msra.mxu0 0.0
  %104 = vmatprep.subr.mxu0 0.0
  %105 = vmatpush1.msra.mxu0 0.0
  %106 = vmatprep.subr.mxu0 0.0
  %107 = vmatpush1.msra.mxu0 0.0
  %108 = vmatprep.subr.mxu0 0.0
  %109 = vmatpush1.msra.mxu0 0.0
  %110 = vmatprep.subr.mxu0 0.0
  %111 = vmatpush1.msra.mxu0 0.0
  %112 = vmatprep.mubr.f32.mxu0 0.0
  %113 = vmatmul.mubr.f32.gmra.mrb[0].mxu0 %v39
  %v114 = vpop.f32.mrb[0].mxu0
  %v115 = vadd.f32 %v30, %v114
  %v116 = vpop.f32.mrb[0].mxu0
  %v117 = vadd.f32 %v34, %v116
  %118 = vdwg.mxu0
  %v119 = vmax.f32 %v115, 0.0
  %v120 = vmax.f32 %v117, 0.0
  %v121 = vld [vmem:[%s3] sm:$0xff]
  %v122 = vld [vmem:[%s3 + $0x8] sm:$0xff]
  %v123 = vld [vmem:[%s3 + $0x10] sm:$0xff]
  %v124 = vld [vmem:[%s3 + $0x18] sm:$0xff]
  %v125 = vld [vmem:[%s3 + $0x20] sm:$0xff]
  %v126 = vld [vmem:[%s3 + $0x28] sm:$0xff]
  %v127 = vld [vmem:[%s3 + $0x30] sm:$0xff]
  %v128 = vld [vmem:[%s3 + $0x38] sm:$0xff]
  %v129 = vld [vmem:[%s3 + $0x40] sm:$0xff]
  %v130 = vld [vmem:[%s3 + $0x48] sm:$0xff]
  %v131 = vld [vmem:[%s3 + $0x50] sm:$0xff]
  %v132 = vld [vmem:[%s3 + $0x58] sm:$0xff]
  %v133 = vld [vmem:[%s3 + $0x60] sm:$0xff]
  %v134 = vld [vmem:[%s3 + $0x68] sm:$0xff]
  %v135 = vld [vmem:[%s3 + $0x70] sm:$0xff]
  %v136 = vld [vmem:[%s3 + $0x78] sm:$0xff]
  %v137 = vld [vmem:[%s3 + $0x80] sm:$0xff]
  %v138 = vld [vmem:[%s3 + $0x88] sm:$0xff]
  %v139 = vld [vmem:[%s3 + $0x90] sm:$0xff]
  %v140 = vld [vmem:[%s3 + $0x98] sm:$0xff]
  %v141 = vld [vmem:[%s3 + $0xa0] sm:$0xff]
  %v142 = vld [vmem:[%s3 + $0xa8] sm:$0xff]
  %v143 = vld [vmem:[%s3 + $0xb0] sm:$0xff]
  %v144 = vld [vmem:[%s3 + $0xb8] sm:$0xff]
  %v145 = vld [vmem:[%s3 + $0xc0] sm:$0xff]
  %v146 = vld [vmem:[%s3 + $0xc8] sm:$0xff]
  %v147 = vld [vmem:[%s3 + $0xd0] sm:$0xff]
  %v148 = vld [vmem:[%s3 + $0xd8] sm:$0xff]
  %v149 = vld [vmem:[%s3 + $0xe0] sm:$0xff]
  %v150 = vld [vmem:[%s3 + $0xe8] sm:$0xff]
  %v151 = vld [vmem:[%s3 + $0xf0] sm:$0xff]
  %v152 = vld [vmem:[%s3 + $0xf8] sm:$0xff]
  %153 = vmatprep.subr.mxu0 0.0
  %154 = vmatpush1.msra.mxu0 %v121
  %155 = vmatprep.subr.mxu0 0.0
  %156 = vmatpush1.msra.mxu0 %v122
  %157 = vmatprep.subr.mxu0 0.0
  %158 = vmatpush1.msra.mxu0 %v123
  %159 = vmatprep.subr.mxu0 0.0
  %160 = vmatpush1.msra.mxu0 %v124
  %161 = vmatprep.subr.mxu0 0.0
  %162 = vmatpush1.msra.mxu0 %v125
  %163 = vmatprep.subr.mxu0 0.0
  %164 = vmatpush1.msra.mxu0 %v126
  %165 = vmatprep.subr.mxu0 0.0
  %166 = vmatpush1.msra.mxu0 %v127
  %167 = vmatprep.subr.mxu0 0.0
  %168 = vmatpush1.msra.mxu0 %v128
  %169 = vmatprep.subr.mxu0 0.0
  %170 = vmatpush1.msra.mxu0 %v129
  %171 = vmatprep.subr.mxu0 0.0
  %172 = vmatpush1.msra.mxu0 %v130
  %173 = vmatprep.subr.mxu0 0.0
  %174 = vmatpush1.msra.mxu0 %v131
  %175 = vmatprep.subr.mxu0 0.0
  %176 = vmatpush1.msra.mxu0 %v132
  %177 = vmatprep.subr.mxu0 0.0
  %178 = vmatpush1.msra.mxu0 %v133
  %179 = vmatprep.subr.mxu0 0.0
  %180 = vmatpush1.msra.mxu0 %v134
  %181 = vmatprep.subr.mxu0 0.0
  %182 = vmatpush1.msra.mxu0 %v135
  %183 = vmatprep.subr.mxu0 0.0
  %184 = vmatpush1.msra.mxu0 %v136
  %185 = vmatprep.subr.mxu0 0.0
  %186 = vmatpush1.msra.mxu0 %v137
  %187 = vmatprep.subr.mxu0 0.0
  %188 = vmatpush1.msra.mxu0 %v138
  %189 = vmatprep.subr.mxu0 0.0
  %190 = vmatpush1.msra.mxu0 %v139
  %191 = vmatprep.subr.mxu0 0.0
  %192 = vmatpush1.msra.mxu0 %v140
  %193 = vmatprep.subr.mxu0 0.0
  %194 = vmatpush1.msra.mxu0 %v141
  %195 = vmatprep.subr.mxu0 0.0
  %196 = vmatpush1.msra.mxu0 %v142
  %197 = vmatprep.subr.mxu0 0.0
  %198 = vmatpush1.msra.mxu0 %v143
  %199 = vmatprep.subr.mxu0 0.0
  %200 = vmatpush1.msra.mxu0 %v144
  %201 = vmatprep.subr.mxu0 0.0
  %202 = vmatpush1.msra.mxu0 %v145
  %203 = vmatprep.subr.mxu0 0.0
  %204 = vmatpush1.msra.mxu0 %v146
  %205 = vmatprep.subr.mxu0 0.0
  %206 = vmatpush1.msra.mxu0 %v147
  %207 = vmatprep.subr.mxu0 0.0
  %208 = vmatpush1.msra.mxu0 %v148
  %209 = vmatprep.subr.mxu0 0.0
  %210 = vmatpush1.msra.mxu0 %v149
  %211 = vmatprep.subr.mxu0 0.0
  %212 = vmatpush1.msra.mxu0 %v150
  %213 = vmatprep.subr.mxu0 0.0
  %214 = vmatpush1.msra.mxu0 %v151
  %215 = vmatprep.subr.mxu0 0.0
  %216 = vmatpush1.msra.mxu0 %v152
  %217 = vmatprep.mubr.f32.mxu0 %v120
  %218 = vmatmul.mubr.f32.gmra.mrb[0].mxu0 %v119
  %v219 = vpop.f32.mrb[0].mxu0
  %v220 = vadd.f32 0.0, %v219
  %v221 = vpop.f32.mrb[0].mxu0
  %222 = vdwg.mxu0
  %v223 = vld [vmem:[%s4] sm:$0x1]
  %v225 = vlaneseq
  %v226 = vshrl.u32 %v225, 7
  %v227 = vsub.s32 0, %v226
  %v228 = vrot.slane %v223, %v227
  %v230 = vadd.f32 %v220, %v228
  %vm231 = vcmask 15360
  %232 = vst.msk [vmem:[%s5] sm:$0xff] %vm231, %v230
  // Predicated region
  $region22: #{controller_forward.1} parent=0 // pred_check
    _
  $region23: #{controller_forward.1} parent=0 // pred_check_branch
    %234 = sbr.rel (0) target = $region25
  $region24: #{controller_forward.1} parent=0 // pred_region
    _
  $region25: #{controller_forward.1} parent=0 // pred_fallthru
    _
  // Predicated region
  $region26: #{controller_forward.1} parent=0 // pred_check
    _
  $region27: #{controller_forward.1} parent=0 // pred_check_branch
    %236 = sbr.rel (0) target = $region29
  $region28: #{controller_forward.1} parent=0 // pred_region
    _
  $region29: #{controller_forward.1} parent=0 // pred_fallthru
    _

</llo_original>
